<compile_context>
chip_gen: v7x
topology: tpu7x:2x2x1
jax: 0.10.0
libtpu: 0.0.40
codegen_flags: <defaults>
</compile_context>

<pallas_src>
import functools

import jax
import jax.numpy as jnp
from jax.experimental import pallas as pl
from jax.experimental.pallas import tpu as pltpu


def _round_up(x, m):
    return ((x + m - 1) // m) * m


def _stacked_encoder_kernel(x_ref, wa_ref, ba_ref, wb_ref, bb_ref, out_ref):
    """Fused encoder_a -> encoder_b on one row tile.

    encoder_a: h = relu(x @ Wa + ba)
    encoder_b: y = relu(h @ Wb + bb)

    Matmul operands are bf16 (native single-pass MXU), accumulation is f32.
    """
    x = x_ref[...]
    if x_ref.dtype != jnp.bfloat16:
        x = x.astype(jnp.bfloat16)          # VPU cast; avoids slow f32 MXU path

    h = jnp.dot(x, wa_ref[...], preferred_element_type=jnp.float32)
    h = jnp.maximum(h + ba_ref[...], 0.0)                 # (tile_m, hidden_p) f32

    y = jnp.dot(h.astype(jnp.bfloat16), wb_ref[...],
                preferred_element_type=jnp.float32)
    y = jnp.maximum(y + bb_ref[...], 0.0)                 # (tile_m, size_out_p) f32

    out_ref[...] = y.astype(out_ref.dtype)


def _resident_spec(shape):
    """Constant-index BlockSpec: fetched once, single-buffered in VMEM."""
    index_map = lambda i: (0, 0)
    if hasattr(pl, "Buffered"):
        try:
            return pl.BlockSpec(shape, index_map,
                                pipeline_mode=pl.Buffered(buffer_count=1))
        except TypeError:
            pass  # older BlockSpec signature without pipeline_mode
    return pl.BlockSpec(shape, index_map)


def _choose_tile_m(n_rows, size_in, hidden_p, size_out_p, in_bytes, out_bytes,
                   requested, vmem_budget):
    """Row-tile height: multiple of 128 (or the whole row count if <= 128),
    sized against the VMEM budget, and split so the 'parallel' grid axis has
    at least two tiles when there is enough work (v7x megacore)."""
    n8 = _round_up(max(n_rows, 1), 8)
    if n8 <= 128:
        return n8
    # Per-row VMEM bytes: double-buffered x/out tiles + f32 and bf16 copies of
    # the hidden activation + the f32 output before the final cast.
    per_row = (2 * size_in * in_bytes
               + 2 * size_out_p * out_bytes
               + hidden_p * (4 + 2)
               + size_out_p * 4)
    resident = ((size_in + size_out_p) * hidden_p * 2    # bf16 weights, 1 buffer
                + (hidden_p + size_out_p) * 4)           # f32 biases
    # TODO(synk): if resident weights alone exceed the v7x budget, add a
    # size_out / hidden grid axis and stream weight tiles instead.
    cap = max(128, (vmem_budget - resident) // max(per_row, 1))
    tm = min(int(requested), int(cap))
    tm = min(tm, _round_up(pl.cdiv(n8, 2), 128))         # >= 2 row tiles
    tm = max(128, (tm // 128) * 128)                     # clean 128-row tiling
    return tm


@functools.partial(jax.jit, static_argnames=("tile_m", "out_dtype"))
def stacked_encoder_forward(states, memory, wa, ba, wb, bb, *,
                            tile_m=512, out_dtype=jnp.float32):
    """StackedEncoder.forward(states, memory) -> (encoded_states, memory)."""
    size_in, hidden = wa.shape
    size_out = wb.shape[1]
    batch = states.shape[0]

    # Lane-dense feature axes: pad hidden / size_out to multiples of 128.
    # Zero padding is exact: padded hidden columns are relu(0 + 0) = 0 and flow
    # through zero rows of Wb; padded output columns are sliced off below.
    hidden_p = _round_up(hidden, 128)
    size_out_p = _round_up(size_out, 128)

    wa_p = jnp.pad(wa.astype(jnp.bfloat16), ((0, 0), (0, hidden_p - hidden)))
    ba_p = jnp.pad(ba.astype(jnp.float32).reshape(1, hidden),
                   ((0, 0), (0, hidden_p - hidden)))
    wb_p = jnp.pad(wb.astype(jnp.bfloat16),
                   ((0, hidden_p - hidden), (0, size_out_p - size_out)))
    bb_p = jnp.pad(bb.astype(jnp.float32).reshape(1, size_out),
                   ((0, 0), (0, size_out_p - size_out)))

    # IEncoder contract: operate on states.view(-1, size_in).
    x = states.reshape(-1, size_in)
    n = x.shape[0]
    n8 = _round_up(n, 8)                 # pad rows only to a sublane multiple
    if n8 != n:
        x = jnp.pad(x, ((0, n8 - n), (0, 0)))

    # Scoped-VMEM budget that is valid on every generation (v5e default is only
    # 16 MiB -> raise it explicitly; v7x physical 64 MiB per TC -> 32 is safe).
    vmem_limit = 32 * 1024 * 1024
    tm = _choose_tile_m(
        n, size_in, hidden_p, size_out_p,
        in_bytes=jnp.dtype(x.dtype).itemsize,
        out_bytes=jnp.dtype(out_dtype).itemsize,
        requested=tile_m, vmem_budget=int(vmem_limit * 0.85))
    grid = (pl.cdiv(n8, tm),)

    n_work = grid[0] * tm
    flops = 2 * n_work * (size_in * hidden_p + hidden_p * size_out_p)
    bytes_accessed = (n8 * size_in * jnp.dtype(x.dtype).itemsize
                      + wa_p.size * 2 + wb_p.size * 2
                      + (hidden_p + size_out_p) * 4
                      + n8 * size_out_p * jnp.dtype(out_dtype).itemsize)
    cost = pl.CostEstimate(flops=flops, transcendentals=0,
                           bytes_accessed=bytes_accessed)

    out = pl.pallas_call(
        _stacked_encoder_kernel,
        out_shape=jax.ShapeDtypeStruct((n8, size_out_p), out_dtype),
        grid_spec=pltpu.PrefetchScalarGridSpec(
            num_scalar_prefetch=0,
            grid=grid,
            in_specs=[
                # Row tile of flattened states: streamed / double-buffered.
                pl.BlockSpec((tm, size_in), lambda i: (i, 0)),
                # Weights & biases: resident in VMEM, single-buffered.
                _resident_spec((size_in, hidden_p)),
                _resident_spec((1, hidden_p)),
                _resident_spec((hidden_p, size_out_p)),
                _resident_spec((1, size_out_p)),
            ],
            out_specs=pl.BlockSpec((tm, size_out_p), lambda i: (i, 0)),
        ),
        compiler_params=pltpu.CompilerParams(
            dimension_semantics=("parallel",),   # row tiles are independent
            vmem_limit_bytes=vmem_limit,
        ),
        cost_estimate=cost,
    )(x, wa_p, ba_p, wb_p, bb_p)

    # FC IEncoder pattern: un-flatten back to (batch, -1).  Memory is untouched
    # (no RNN stage), returned as-is, exactly like the PyTorch module.
    out = out[:n, :size_out].reshape(batch, -1)
    return out, memory


def _reference(states, memory, wa, ba, wb, bb):
    """Pure-JAX reference of StackedEncoder(FC, FC).forward (bf16 operands,
    f32 accumulation — mirrors the kernel's MXU math)."""
    x = states.reshape(-1, wa.shape[0]).astype(jnp.bfloat16)
    h = jnp.maximum(
        jnp.dot(x, wa.astype(jnp.bfloat16), preferred_element_type=jnp.float32)
        + ba.astype(jnp.float32).reshape(1, -1), 0.0)
    y = jnp.maximum(
        jnp.dot(h.astype(jnp.bfloat16), wb.astype(jnp.bfloat16),
                preferred_element_type=jnp.float32)
        + bb.astype(jnp.float32).reshape(1, -1), 0.0)
    return y.reshape(states.shape[0], -1).astype(jnp.float32), memory


if __name__ == "__main__":
    # Config 1: lane-aligned feature dims, 256 flattened rows -> 2 row tiles.
    B, T = 8, 32
    SIZE_IN, HIDDEN, SIZE_OUT, N_FEATURES = 32, 128, 128, 8

    key = jax.random.PRNGKey(0)
    k1, k2, k3, k4, k5 = jax.random.split(key, 5)
    states = jax.random.normal(k1, (B, T, SIZE_IN), dtype=jnp.float32)
    memory = jnp.zeros((B, N_FEATURES), jnp.float32)
    wa = jax.random.normal(k2, (SIZE_IN, HIDDEN), dtype=jnp.float32) * 0.1
    ba = jax.random.normal(k3, (1, HIDDEN), dtype=jnp.float32) * 0.1
    wb = jax.random.normal(k4, (HIDDEN, SIZE_OUT), dtype=jnp.float32) * 0.1
    bb = jax.random.normal(k5, (1, SIZE_OUT), dtype=jnp.float32) * 0.1

    out, mem_out = stacked_encoder_forward(states, memory, wa, ba, wb, bb)
    jax.block_until_ready((out, mem_out))
    ref_out, ref_mem = _reference(states, memory, wa, ba, wb, bb)
    assert out.shape == ref_out.shape, (out.shape, ref_out.shape)
    assert jnp.allclose(out, ref_out, atol=2e-2, rtol=2e-2), "states mismatch"
    assert jnp.allclose(mem_out, ref_mem), "memory mismatch"

    # Config 2: ragged row count (pad-to-8) and feature dims that need the
    # lane-padding-to-128 path.
    B2, T2 = 3, 11
    SI2, H2, SO2, NF2 = 20, 96, 72, 4
    kk = jax.random.split(jax.random.PRNGKey(1), 6)
    states2 = jax.random.normal(kk[0], (B2, T2, SI2), dtype=jnp.float32)
    memory2 = jax.random.normal(kk[1], (B2, NF2), dtype=jnp.float32)
    wa2 = jax.random.normal(kk[2], (SI2, H2), dtype=jnp.float32) * 0.1
    ba2 = jax.random.normal(kk[3], (1, H2), dtype=jnp.float32) * 0.1
    wb2 = jax.random.normal(kk[4], (H2, SO2), dtype=jnp.float32) * 0.1
    bb2 = jax.random.normal(kk[5], (1, SO2), dtype=jnp.float32) * 0.1

    out2, mem2 = stacked_encoder_forward(states2, memory2, wa2, ba2, wb2, bb2)
    jax.block_until_ready((out2, mem2))
    ref2, refm2 = _reference(states2, memory2, wa2, ba2, wb2, bb2)
    assert out2.shape == ref2.shape, (out2.shape, ref2.shape)
    assert jnp.allclose(out2, ref2, atol=2e-2, rtol=2e-2), "states2 mismatch"
    assert jnp.allclose(mem2, refm2), "memory2 mismatch"

    print("KERNEL_OK")
</pallas_src>

<mosaic_0001>
module attributes {stable_mosaic.version = 11 : i64} {
  func.func @_stacked_encoder_kernel(%arg0: i32, %arg1: memref<128x32xf32, #tpu.memory_space<vmem>>, %arg2: memref<32x128xbf16, #tpu.memory_space<vmem>>, %arg3: memref<1x128xf32, #tpu.memory_space<vmem>>, %arg4: memref<128x128xbf16, #tpu.memory_space<vmem>>, %arg5: memref<1x128xf32, #tpu.memory_space<vmem>>, %arg6: memref<128x128xf32, #tpu.memory_space<vmem>>) attributes {dimension_semantics = [#tpu.dimension_semantics<parallel>], iteration_bounds = array<i64: 2>, scalar_prefetch = 0 : i64, scratch_operands = 0 : i64, tpu.core_type = #tpu.core_type<tc>, window_params = [{transform_indices = @transform_0, window_bounds = array<i64: 128, 32>}, {pipeline_mode = #tpu.pipeline_mode<synchronous>, transform_indices = @transform_1, window_bounds = array<i64: 32, 128>}, {pipeline_mode = #tpu.pipeline_mode<synchronous>, transform_indices = @transform_2, window_bounds = array<i64: 1, 128>}, {pipeline_mode = #tpu.pipeline_mode<synchronous>, transform_indices = @transform_3, window_bounds = array<i64: 128, 128>}, {pipeline_mode = #tpu.pipeline_mode<synchronous>, transform_indices = @transform_4, window_bounds = array<i64: 1, 128>}, {transform_indices = @transform_5, window_bounds = array<i64: 128, 128>}]} {
    %c0 = arith.constant 0 : index
    %c0_0 = arith.constant 0 : index
    %0 = vector.load %arg1[%c0, %c0_0] : memref<128x32xf32, #tpu.memory_space<vmem>>, vector<128x32xf32>
    %1 = arith.truncf %0 : vector<128x32xf32> to vector<128x32xbf16>
    %c0_1 = arith.constant 0 : index
    %c0_2 = arith.constant 0 : index
    %2 = vector.load %arg2[%c0_1, %c0_2] : memref<32x128xbf16, #tpu.memory_space<vmem>>, vector<32x128xbf16>
    %cst = arith.constant dense<0.000000e+00> : vector<128x128xf32>
    %3 = tpu.matmul %1, %2, %cst {dimension_numbers = #tpu.dot_dimension_numbers<[1], [0], [0], [1], [0, 0, 1, 1], [], []>} : vector<128x32xbf16>, vector<32x128xbf16>, vector<128x128xf32> -> vector<128x128xf32>
    %c0_3 = arith.constant 0 : index
    %c0_4 = arith.constant 0 : index
    %4 = vector.load %arg3[%c0_3, %c0_4] : memref<1x128xf32, #tpu.memory_space<vmem>>, vector<1x128xf32>
    %5 = vector.broadcast %4 : vector<1x128xf32> to vector<128x128xf32>
    %6 = arith.addf %3, %5 : vector<128x128xf32>
    %cst_5 = arith.constant 0.000000e+00 : f32
    %7 = vector.broadcast %cst_5 : f32 to vector<128x128xf32>
    %8 = arith.maximumf %6, %7 : vector<128x128xf32>
    %9 = arith.truncf %8 : vector<128x128xf32> to vector<128x128xbf16>
    %c0_6 = arith.constant 0 : index
    %c0_7 = arith.constant 0 : index
    %10 = vector.load %arg4[%c0_6, %c0_7] : memref<128x128xbf16, #tpu.memory_space<vmem>>, vector<128x128xbf16>
    %cst_8 = arith.constant dense<0.000000e+00> : vector<128x128xf32>
    %11 = tpu.matmul %9, %10, %cst_8 {dimension_numbers = #tpu.dot_dimension_numbers<[1], [0], [0], [1], [0, 0, 1, 1], [], []>} : vector<128x128xbf16>, vector<128x128xbf16>, vector<128x128xf32> -> vector<128x128xf32>
    %c0_9 = arith.constant 0 : index
    %c0_10 = arith.constant 0 : index
    %12 = vector.load %arg5[%c0_9, %c0_10] : memref<1x128xf32, #tpu.memory_space<vmem>>, vector<1x128xf32>
    %13 = vector.broadcast %12 : vector<1x128xf32> to vector<128x128xf32>
    %14 = arith.addf %11, %13 : vector<128x128xf32>
    %cst_11 = arith.constant 0.000000e+00 : f32
    %15 = vector.broadcast %cst_11 : f32 to vector<128x128xf32>
    %16 = arith.maximumf %14, %15 : vector<128x128xf32>
    %c0_12 = arith.constant 0 : index
    %c0_13 = arith.constant 0 : index
    %17 = vector.load %arg6[%c0_12, %c0_13] : memref<128x128xf32, #tpu.memory_space<vmem>>, vector<128x128xf32>
    tpu.vector_store %arg6[%c0_12, %c0_13], %16 {strides = array<i32>} : memref<128x128xf32, #tpu.memory_space<vmem>>, vector<128x128xf32>,
    return
  }
  func.func @transform_0(%arg0: i32) -> (i32, i32) {
    %c0_i32 = arith.constant 0 : i32
    %c0_i32_0 = arith.constant 0 : i32
    return %arg0, %c0_i32 : i32, i32
  }
  func.func @transform_1(%arg0: i32) -> (i32, i32) {
    %c0_i32 = arith.constant 0 : i32
    %c0_i32_0 = arith.constant 0 : i32
    %c0_i32_1 = arith.constant 0 : i32
    return %c0_i32, %c0_i32_0 : i32, i32
  }
  func.func @transform_2(%arg0: i32) -> (i32, i32) {
    %c0_i32 = arith.constant 0 : i32
    %c0_i32_0 = arith.constant 0 : i32
    %c0_i32_1 = arith.constant 0 : i32
    return %c0_i32, %c0_i32_0 : i32, i32
  }
  func.func @transform_3(%arg0: i32) -> (i32, i32) {
    %c0_i32 = arith.constant 0 : i32
    %c0_i32_0 = arith.constant 0 : i32
    %c0_i32_1 = arith.constant 0 : i32
    return %c0_i32, %c0_i32_0 : i32, i32
  }
  func.func @transform_4(%arg0: i32) -> (i32, i32) {
    %c0_i32 = arith.constant 0 : i32
    %c0_i32_0 = arith.constant 0 : i32
    %c0_i32_1 = arith.constant 0 : i32
    return %c0_i32, %c0_i32_0 : i32, i32
  }
  func.func @transform_5(%arg0: i32) -> (i32, i32) {
    %c0_i32 = arith.constant 0 : i32
    %c0_i32_0 = arith.constant 0 : i32
    return %arg0, %c0_i32 : i32, i32
  }
}

</mosaic_0001>

<llo_original>
// kernel: stacked_encoder_forward.1
$region0: #{stacked_encoder_forward.1}
  #allocation0 [shape = 'u32[]', space=smem, size = 0x4, offset = 0x4, fixed_abs, tag = 'smem constant byte address 0x4 - core index']
  #allocation1 [shape = 'u32[144,128]{1,0:T(1,128)}', space=vmem, size = 0x12000, scoped, tag = 'internal scratch']
  %s0 = inlined_call_operand.hbm [shape: f32[256,32], index: 0, kind: input, shape index: {}]
  %s1 = inlined_call_operand.vmem [shape: bf16[32,128], index: 1, kind: input, shape index: {}]
  %s2 = inlined_call_operand.vmem [shape: f32[1,128], index: 2, kind: input, shape index: {}]
  %s3 = inlined_call_operand.vmem [shape: bf16[128,128], index: 3, kind: input, shape index: {}]
  %s4 = inlined_call_operand.vmem [shape: f32[1,128], index: 4, kind: input, shape index: {}]
  %s5 = inlined_call_operand.vmem [shape: f32[256,128], index: 5, kind: output, shape index: {}]
  %s6 = sld [smem:[#allocation0]]
  $region57: #{stacked_encoder_forward.1} parent=0
    _
  %s8 = ssub.s32 1, %s6
  %s9 = scalar_select 0, %s8, %s6
  $region1: #{stacked_encoder_forward.1} parent=0
    #allocation2 [shape = 'u8[131072]{0}', space=vmem, size = 0x20000, scoped, tag = 'input window, operand 0']
    #allocation3 [shape = 's32[2]{0}', space=sflag, size = 0x8, scoped, tag = 'scoped memory for stacked_encoder_forward.1']
    %10 = vsyncpa [#allocation3], 0
    %s11 = scalar_lea.sflag [#allocation3], 1
    %12 = vsyncpa %s11, 0
    loop: start=0, step=1, limit=4
    $region2: #{stacked_encoder_forward.1} parent=1 // loop_pre_header
      _
    $region3: #{stacked_encoder_forward.1} parent=1 // loop_header
      %s14 = sphi 0, %s18
      %p15 = scmp.ge.s32.totalorder %s14, 4
      %s24 = sphi 0, %s26
      %s27 = sphi 0, %s24
      %s28 = sphi 0, %s27
      %s44 = sphi 0, %s28
      %s48 = sphi 0, %s48
      %s50 = sphi 0, %s48
      %s51 = sphi 0, %s50
      %s65 = sphi 0, %s51
      %s69 = sphi 0, %s69
      %s71 = sphi 0, %s69
      %s72 = sphi 0, %s71
      %s86 = sphi 0, %s72
      %s90 = sphi 0, %s90
      %s92 = sphi 0, %s90
      %s93 = sphi 0, %s92
      %s107 = sphi 0, %s93
      %s111 = sphi 0, %s111
      %s113 = sphi 0, %s111
      %s114 = sphi 0, %s113
      %s128 = sphi 0, %s114
      %s134 = sphi 0, %s136
      %s137 = sphi 0, %s134
      %s138 = sphi 0, %s137
      %s154 = sphi 0, %s138
    $region4: #{stacked_encoder_forward.1} parent=1 // loop_header_branch
      %17 = sbr.rel (%p15) target = $region8
    $region5: #{stacked_encoder_forward.1} parent=1 // loop_body
      %s19 = ssub.s32 %s14, 1
      %s20 = ssub.s32 %s14, 2
      %s21 = sadd.s32 %s14, 1
      %s22 = ssub.s32 %s14, %s21
      %p23 = scmp.eq.s32.totalorder %s22, 0
      %s25 = sadd.s32 %s24, 1
      %s26 = scalar_select %p23, %s24, %s25
      %p29 = pneg %p23
      %p30 = scmp.eq.s32.totalorder %s14, 1
      %p31 = por %p29, %p30
      %p32 = scmp.ne.s32.totalorder %s24, %s27
      %p33 = scmp.eq.s32.totalorder %s14, 0
      %p34 = por %p32, %p33
      %p35 = scmp.ne.s32.totalorder %s24, %s27
      %p36 = scmp.eq.s32.totalorder %s19, 1
      %p37 = por %p35, %p36
      %p38 = scmp.ne.s32.totalorder %s27, %s28
      %p39 = scmp.eq.s32.totalorder %s19, 0
      %p40 = por %p38, %p39
      %p41 = scmp.ne.s32.totalorder %s27, %s28
      %p42 = scmp.eq.s32.totalorder %s20, 1
      %p43 = por %p41, %p42
      %p45 = scmp.ne.s32.totalorder %s28, %s44
      %p46 = scmp.eq.s32.totalorder %s20, 0
      %p47 = por %p45, %p46
      %s49 = sadd.s32 %s48, 1
      %p52 = scmp.eq.s32.totalorder %s14, 1
      %p53 = scmp.ne.s32.totalorder %s48, %s50
      %p54 = scmp.eq.s32.totalorder %s14, 0
      %p55 = por %p53, %p54
      %p56 = scmp.ne.s32.totalorder %s48, %s50
      %p57 = scmp.eq.s32.totalorder %s19, 1
      %p58 = por %p56, %p57
      %p59 = scmp.ne.s32.totalorder %s50, %s51
      %p60 = scmp.eq.s32.totalorder %s19, 0
      %p61 = por %p59, %p60
      %p62 = scmp.ne.s32.totalorder %s50, %s51
      %p63 = scmp.eq.s32.totalorder %s20, 1
      %p64 = por %p62, %p63
      %p66 = scmp.ne.s32.totalorder %s51, %s65
      %p67 = scmp.eq.s32.totalorder %s20, 0
      %p68 = por %p66, %p67
      %s70 = sadd.s32 %s69, 1
      %p73 = scmp.eq.s32.totalorder %s14, 1
      %p74 = scmp.ne.s32.totalorder %s69, %s71
      %p75 = scmp.eq.s32.totalorder %s14, 0
      %p76 = por %p74, %p75
      %p77 = scmp.ne.s32.totalorder %s69, %s71
      %p78 = scmp.eq.s32.totalorder %s19, 1
      %p79 = por %p77, %p78
      %p80 = scmp.ne.s32.totalorder %s71, %s72
      %p81 = scmp.eq.s32.totalorder %s19, 0
      %p82 = por %p80, %p81
      %p83 = scmp.ne.s32.totalorder %s71, %s72
      %p84 = scmp.eq.s32.totalorder %s20, 1
      %p85 = por %p83, %p84
      %p87 = scmp.ne.s32.totalorder %s72, %s86
      %p88 = scmp.eq.s32.totalorder %s20, 0
      %p89 = por %p87, %p88
      %s91 = sadd.s32 %s90, 1
      %p94 = scmp.eq.s32.totalorder %s14, 1
      %p95 = scmp.ne.s32.totalorder %s90, %s92
      %p96 = scmp.eq.s32.totalorder %s14, 0
      %p97 = por %p95, %p96
      %p98 = scmp.ne.s32.totalorder %s90, %s92
      %p99 = scmp.eq.s32.totalorder %s19, 1
      %p100 = por %p98, %p99
      %p101 = scmp.ne.s32.totalorder %s92, %s93
      %p102 = scmp.eq.s32.totalorder %s19, 0
      %p103 = por %p101, %p102
      %p104 = scmp.ne.s32.totalorder %s92, %s93
      %p105 = scmp.eq.s32.totalorder %s20, 1
      %p106 = por %p104, %p105
      %p108 = scmp.ne.s32.totalorder %s93, %s107
      %p109 = scmp.eq.s32.totalorder %s20, 0
      %p110 = por %p108, %p109
      %s112 = sadd.s32 %s111, 1
      %p115 = scmp.eq.s32.totalorder %s14, 1
      %p116 = scmp.ne.s32.totalorder %s111, %s113
      %p117 = scmp.eq.s32.totalorder %s14, 0
      %p118 = por %p116, %p117
      %p119 = scmp.ne.s32.totalorder %s111, %s113
      %p120 = scmp.eq.s32.totalorder %s19, 1
      %p121 = por %p119, %p120
      %p122 = scmp.ne.s32.totalorder %s113, %s114
      %p123 = scmp.eq.s32.totalorder %s19, 0
      %p124 = por %p122, %p123
      %p125 = scmp.ne.s32.totalorder %s113, %s114
      %p126 = scmp.eq.s32.totalorder %s20, 1
      %p127 = por %p125, %p126
      %p129 = scmp.ne.s32.totalorder %s114, %s128
      %p130 = scmp.eq.s32.totalorder %s20, 0
      %p131 = por %p129, %p130
      %s132 = ssub.s32 %s14, %s21
      %p133 = scmp.eq.s32.totalorder %s132, 0
      %s135 = sadd.s32 %s134, 1
      %s136 = scalar_select %p133, %s134, %s135
      %p139 = pneg %p133
      %p140 = scmp.eq.s32.totalorder %s14, 1
      %p141 = por %p139, %p140
      %p142 = scmp.ne.s32.totalorder %s134, %s137
      %p143 = scmp.eq.s32.totalorder %s14, 0
      %p144 = por %p142, %p143
      %p145 = scmp.ne.s32.totalorder %s134, %s137
      %p146 = scmp.eq.s32.totalorder %s19, 1
      %p147 = por %p145, %p146
      %p148 = scmp.ne.s32.totalorder %s137, %s138
      %p149 = scmp.eq.s32.totalorder %s19, 0
      %p150 = por %p148, %p149
      %p151 = scmp.ne.s32.totalorder %s137, %s138
      %p152 = scmp.eq.s32.totalorder %s20, 1
      %p153 = por %p151, %p152
      %p155 = scmp.ne.s32.totalorder %s138, %s154
      %p156 = scmp.eq.s32.totalorder %s20, 0
      %p157 = por %p155, %p156
      %p158 = scmp.le.s32.totalorder 1, %s14
      %p159 = scmp.lt.s32.totalorder %s14, 3
      %p160 = pnand %p158, %p159
      %p161 = pneg %p160
      // Predicated region
      $region9: #{stacked_encoder_forward.1} parent=5 // pred_check
        _
      $region10: #{stacked_encoder_forward.1} parent=5 // pred_check_branch
        %163 = sbr.rel (%p160) target = $region12
      $region11: #{stacked_encoder_forward.1} parent=5 // pred_region
        %s164 = ssub.s32 %s14, 1
        // Predicated region
        $region13: #{stacked_encoder_forward.1} parent=11 // pred_check
          %p165 = pneg %p61
        $region14: #{stacked_encoder_forward.1} parent=11 // pred_check_branch
          %167 = sbr.rel (%p165) target = $region16
        $region15: #{stacked_encoder_forward.1} parent=11 // pred_region
          _
        $region16: #{stacked_encoder_forward.1} parent=11 // pred_fallthru
          _
        // Predicated region
        $region17: #{stacked_encoder_forward.1} parent=11 // pred_check
          %p168 = pneg %p82
        $region18: #{stacked_encoder_forward.1} parent=11 // pred_check_branch
          %170 = sbr.rel (%p168) target = $region20
        $region19: #{stacked_encoder_forward.1} parent=11 // pred_region
          _
        $region20: #{stacked_encoder_forward.1} parent=11 // pred_fallthru
          _
        // Predicated region
        $region21: #{stacked_encoder_forward.1} parent=11 // pred_check
          %p171 = pneg %p103
        $region22: #{stacked_encoder_forward.1} parent=11 // pred_check_branch
          %173 = sbr.rel (%p171) target = $region24
        $region23: #{stacked_encoder_forward.1} parent=11 // pred_region
          _
        $region24: #{stacked_encoder_forward.1} parent=11 // pred_fallthru
          _
        // Predicated region
        $region25: #{stacked_encoder_forward.1} parent=11 // pred_check
          %p174 = pneg %p124
        $region26: #{stacked_encoder_forward.1} parent=11 // pred_check_branch
          %176 = sbr.rel (%p174) target = $region28
        $region27: #{stacked_encoder_forward.1} parent=11 // pred_region
          _
        $region28: #{stacked_encoder_forward.1} parent=11 // pred_fallthru
          _
      $region12: #{stacked_encoder_forward.1} parent=5 // pred_fallthru
        _
      %p177 = scmp.lt.s32.totalorder %s14, 2
      // Predicated region
      $region29: #{stacked_encoder_forward.1} parent=5 // pred_check
        %p178 = pneg %p177
      $region30: #{stacked_encoder_forward.1} parent=5 // pred_check_branch
        %180 = sbr.rel (%p178) target = $region32
      $region31: #{stacked_encoder_forward.1} parent=5 // pred_region
        // Predicated region
        $region33: #{stacked_encoder_forward.1} parent=31 // pred_check
          %p181 = pneg %p34
        $region34: #{stacked_encoder_forward.1} parent=31 // pred_check_branch
          %183 = sbr.rel (%p181) target = $region36
        $region35: #{stacked_encoder_forward.1} parent=31 // pred_region
          %s184 = sand.u32 %s24, 1
          %s185 = scalar_lea.sflag [#allocation3], %s184
          %s186 = sand.u32 %s24, 1
          %s187 = smul.addr %s186, 128
          %s188 = scalar_lea.vmem [#allocation2], %s187
          %s189 = smul.u32 16, %s14
          %s191 = ssub.s32 2048, 2048
          %192 = vsyncadd %s185, %s191
          %s193 = smul.addr %s189, 128
          %s194 = scalar_lea.hbm %s0, %s193
          %s195 = sshll.u32 %s188, 4
          %s196 = int_to_ptr.vmem [resolvable:$true] %s195
          %201 = dma.hbm_to_vmem [thread:$0]  %s194, 2048, %s196, %s185, 128, 128, 8
        $region36: #{stacked_encoder_forward.1} parent=31 // pred_fallthru
          _
      $region32: #{stacked_encoder_forward.1} parent=5 // pred_fallthru
        _
      %p202 = scmp.le.s32.totalorder 1, %s14
      %p203 = scmp.lt.s32.totalorder %s14, 3
      %p204 = pnand %p202, %p203
      %p205 = pneg %p204
      // Predicated region
      $region37: #{stacked_encoder_forward.1} parent=5 // pred_check
        _
      $region38: #{stacked_encoder_forward.1} parent=5 // pred_check_branch
        %207 = sbr.rel (%p204) target = $region40
      $region39: #{stacked_encoder_forward.1} parent=5 // pred_region
        %s208 = ssub.s32 %s14, 1
        %s209 = sand.u32 %s27, 1
        %s210 = scalar_lea.sflag [#allocation3], %s209
        %s211 = sand.u32 %s27, 1
        %s212 = smul.addr %s211, 128
        %s213 = scalar_lea.vmem [#allocation2], %s212
        // Predicated region
        $region41: #{stacked_encoder_forward.1} parent=39 // pred_check
          %p214 = pneg %p40
        $region42: #{stacked_encoder_forward.1} parent=39 // pred_check_branch
          %216 = sbr.rel (%p214) target = $region44
        $region43: #{stacked_encoder_forward.1} parent=39 // pred_region
          %217 = dma.done %s210, 2048
        $region44: #{stacked_encoder_forward.1} parent=39 // pred_fallthru
          _
        %s218 = sand.u32 %s27, 1
        %s219 = scalar_lea.sflag [#allocation3], %s218
        %s220 = sand.u32 %s27, 1
        %s221 = smul.addr %s220, 128
        %s222 = scalar_lea.vmem [#allocation2], %s221
        %p223 = pneg %p40
        %p224 = pneg %p37
        %p225 = pneg %p61
        %p226 = pneg %p58
        %p227 = pneg %p82
        %p228 = pneg %p79
        %p229 = pneg %p103
        %p230 = pneg %p100
        %p231 = pneg %p124
        %p232 = pneg %p121
        %p233 = pneg %p150
        %p234 = pneg %p147
        %s235 = smul.u32 16, %s19
        %p236 = scmp.lt.s32.totalorder %s235, 31
        %s237 = scalar_select %p236, %s235, 31
        %s238 = smul.addr %s237, 8
        %s239 = scalar_lea.vmem %s5, %s238
        %s240 = smul.u32 16, %s19
        %s241 = smul.u32 16, %s19
        %p242 = scmp.lt.s32.totalorder %s241, 31
        %s243 = scalar_select %p242, %s241, 31
        %s244 = smul.addr %s243, 8
        %s245 = scalar_lea.vmem %s5, %s244
        %s246 = smul.u32 16, %s19
        %v248 = vld [vmem:[%s213] sm:$0xff]
        %v249 = vld [vmem:[%s213 + $0x8] sm:$0xff]
        %v250 = vld [vmem:[%s213 + $0x10] sm:$0xff]
        %v251 = vld [vmem:[%s213 + $0x18] sm:$0xff]
        %v252 = vld [vmem:[%s213 + $0x20] sm:$0xff]
        %v253 = vld [vmem:[%s213 + $0x28] sm:$0xff]
        %v254 = vld [vmem:[%s213 + $0x30] sm:$0xff]
        %v255 = vld [vmem:[%s213 + $0x38] sm:$0xff]
        %v256 = vld [vmem:[%s213 + $0x40] sm:$0xff]
        %v257 = vld [vmem:[%s213 + $0x48] sm:$0xff]
        %v258 = vld [vmem:[%s213 + $0x50] sm:$0xff]
        %v259 = vld [vmem:[%s213 + $0x58] sm:$0xff]
        %v260 = vld [vmem:[%s213 + $0x60] sm:$0xff]
        %v261 = vld [vmem:[%s213 + $0x68] sm:$0xff]
        %v262 = vld [vmem:[%s213 + $0x70] sm:$0xff]
        %v263 = vld [vmem:[%s213 + $0x78] sm:$0xff]
        %v264 = vpack.c.bf16 %v249, %v248
        %v265 = vpack.c.bf16 %v251, %v250
        %v266 = vpack.c.bf16 %v253, %v252
        %v267 = vpack.c.bf16 %v255, %v254
        %v268 = vpack.c.bf16 %v257, %v256
        %v269 = vpack.c.bf16 %v259, %v258
        %v270 = vpack.c.bf16 %v261, %v260
        %v271 = vpack.c.bf16 %v263, %v262
        %v272 = vld [vmem:[%s1] sm:$0xf]
        %v273 = vld [vmem:[%s1 + $0x4] sm:$0xf]
        %v274 = vld [vmem:[%s1 + $0x8] sm:$0xf]
        %v275 = vld [vmem:[%s1 + $0xc] sm:$0xf]
        %v276 = vld [vmem:[%s2] sm:$0x1]
        %v278 = vlaneseq
        %v279 = vshrl.u32 %v278, 7
        %v280 = vsub.s32 0, %v279
        %v281 = vrot.slane %v276, %v280
        %v287 = vunpack.c.l.b16 %v272
        %v288 = vunpack.c.l.b16 %v273
        %v289 = vunpack.c.l.b16 %v274
        %v290 = vunpack.c.l.b16 %v275
        %v291 = vpack.c.b16 %v288, %v287
        %v292 = vpack.c.b16 %v290, %v289
        %vm295 = vcmask 261120
        %v297 = vsel %vm295, %v264, 0
        %v300 = vsel %vm295, %v265, 0
        %v303 = vsel %vm295, %v266, 0
        %v306 = vsel %vm295, %v267, 0
        %v309 = vsel %vm295, %v268, 0
        %v312 = vsel %vm295, %v269, 0
        %v315 = vsel %vm295, %v270, 0
        %v318 = vsel %vm295, %v271, 0
        %320 = vmatprep.subr.bf16.mxu0 0
        %321 = vmatpush1.bf16.msra.mxu0 %v291
        %322 = vmatprep.subr.bf16.mxu0 0
        %323 = vmatpush1.bf16.msra.mxu0 %v292
        %324 = vmatprep.subr.bf16.mxu0 0
        %325 = vmatpush1.bf16.msra.mxu0 0
        %326 = vmatprep.subr.bf16.mxu0 0
        %327 = vmatpush1.bf16.msra.mxu0 0
        %328 = vmatprep.subr.bf16.mxu0 0
        %329 = vmatpush1.bf16.msra.mxu0 0
        %330 = vmatprep.subr.bf16.mxu0 0
        %331 = vmatpush1.bf16.msra.mxu0 0
        %332 = vmatprep.subr.bf16.mxu0 0
        %333 = vmatpush1.bf16.msra.mxu0 0
        %334 = vmatprep.subr.bf16.mxu0 0
        %335 = vmatpush1.bf16.msra.mxu0 0
        %336 = vmatprep.subr.bf16.mxu0 0
        %337 = vmatpush1.bf16.msra.mxu0 0
        %338 = vmatprep.subr.bf16.mxu0 0
        %339 = vmatpush1.bf16.msra.mxu0 0
        %340 = vmatprep.subr.bf16.mxu0 0
        %341 = vmatpush1.bf16.msra.mxu0 0
        %342 = vmatprep.subr.bf16.mxu0 0
        %343 = vmatpush1.bf16.msra.mxu0 0
        %344 = vmatprep.subr.bf16.mxu0 0
        %345 = vmatpush1.bf16.msra.mxu0 0
        %346 = vmatprep.subr.bf16.mxu0 0
        %347 = vmatpush1.bf16.msra.mxu0 0
        %348 = vmatprep.subr.bf16.mxu0 0
        %349 = vmatpush1.bf16.msra.mxu0 0
        %350 = vmatprep.subr.bf16.mxu0 0
        %351 = vmatpush1.bf16.msra.mxu0 0
        %352 = vmatprep.mubr.bf16.mxu0 0
        %353 = vmatmul.mubr.bf16.gmra.mrb[0].mxu0 %v297
        %v354 = vpop.f32.mrb[0].mxu0
        %v355 = vadd.f32 %v281, %v354
        %v356 = vpop.f32.mrb[0].mxu0
        %v357 = vpop.f32.mrb[0].mxu0
        %v358 = vadd.f32 %v281, %v357
        %v359 = vpop.f32.mrb[0].mxu0
        %360 = vmatprep.mubr.bf16.mxu0 0
        %361 = vmatmul.mubr.bf16.gmra.mrb[0].mxu0 %v300
        %v362 = vpop.f32.mrb[0].mxu0
        %v363 = vadd.f32 %v281, %v362
        %v364 = vpop.f32.mrb[0].mxu0
        %v365 = vpop.f32.mrb[0].mxu0
        %v366 = vadd.f32 %v281, %v365
        %v367 = vpop.f32.mrb[0].mxu0
        %368 = vmatprep.mubr.bf16.mxu0 0
        %369 = vmatmul.mubr.bf16.gmra.mrb[0].mxu0 %v303
        %v370 = vpop.f32.mrb[0].mxu0
        %v371 = vadd.f32 %v281, %v370
        %v372 = vpop.f32.mrb[0].mxu0
        %v373 = vpop.f32.mrb[0].mxu0
        %v374 = vadd.f32 %v281, %v373
        %v375 = vpop.f32.mrb[0].mxu0
        %376 = vmatprep.mubr.bf16.mxu0 0
        %377 = vmatmul.mubr.bf16.gmra.mrb[0].mxu0 %v306
        %v378 = vpop.f32.mrb[0].mxu0
        %v379 = vadd.f32 %v281, %v378
        %v380 = vpop.f32.mrb[0].mxu0
        %v381 = vpop.f32.mrb[0].mxu0
        %v382 = vadd.f32 %v281, %v381
        %v383 = vpop.f32.mrb[0].mxu0
        %384 = vmatprep.mubr.bf16.mxu0 0
        %385 = vmatmul.mubr.bf16.gmra.mrb[0].mxu0 %v309
        %v386 = vpop.f32.mrb[0].mxu0
        %v387 = vadd.f32 %v281, %v386
        %v388 = vpop.f32.mrb[0].mxu0
        %v389 = vpop.f32.mrb[0].mxu0
        %v390 = vadd.f32 %v281, %v389
        %v391 = vpop.f32.mrb[0].mxu0
        %392 = vmatprep.mubr.bf16.mxu0 0
        %393 = vmatmul.mubr.bf16.gmra.mrb[0].mxu0 %v312
        %v394 = vpop.f32.mrb[0].mxu0
        %v395 = vadd.f32 %v281, %v394
        %v396 = vpop.f32.mrb[0].mxu0
        %v397 = vpop.f32.mrb[0].mxu0
        %v398 = vadd.f32 %v281, %v397
        %v399 = vpop.f32.mrb[0].mxu0
        %400 = vmatprep.mubr.bf16.mxu0 0
        %401 = vmatmul.mubr.bf16.gmra.mrb[0].mxu0 %v315
        %v402 = vpop.f32.mrb[0].mxu0
        %v403 = vadd.f32 %v281, %v402
        %v404 = vpop.f32.mrb[0].mxu0
        %v405 = vpop.f32.mrb[0].mxu0
        %v406 = vadd.f32 %v281, %v405
        %v407 = vpop.f32.mrb[0].mxu0
        %408 = vmatprep.mubr.bf16.mxu0 0
        %409 = vmatmul.mubr.bf16.gmra.mrb[0].mxu0 %v318
        %v410 = vpop.f32.mrb[0].mxu0
        %v411 = vadd.f32 %v281, %v410
        %v412 = vpop.f32.mrb[0].mxu0
        %v413 = vpop.f32.mrb[0].mxu0
        %v414 = vadd.f32 %v281, %v413
        %v415 = vpop.f32.mrb[0].mxu0
        %416 = vdwg.mxu0
        %v417 = vmax.f32 %v355, 0.0
        %v418 = vmax.f32 %v358, 0.0
        %v419 = vmax.f32 %v363, 0.0
        %v420 = vmax.f32 %v366, 0.0
        %v421 = vmax.f32 %v371, 0.0
        %v422 = vmax.f32 %v374, 0.0
        %v423 = vmax.f32 %v379, 0.0
        %v424 = vmax.f32 %v382, 0.0
        %v425 = vmax.f32 %v387, 0.0
        %v426 = vmax.f32 %v390, 0.0
        %v427 = vmax.f32 %v395, 0.0
        %v428 = vmax.f32 %v398, 0.0
        %v429 = vmax.f32 %v403, 0.0
        %v430 = vmax.f32 %v406, 0.0
        %v431 = vmax.f32 %v411, 0.0
        %v432 = vmax.f32 %v414, 0.0
        %v433 = vpack.c.bf16 %v418, %v417
        %v434 = vpack.c.bf16 %v420, %v419
        %v435 = vpack.c.bf16 %v422, %v421
        %v436 = vpack.c.bf16 %v424, %v423
        %v437 = vpack.c.bf16 %v426, %v425
        %v438 = vpack.c.bf16 %v428, %v427
        %v439 = vpack.c.bf16 %v430, %v429
        %v440 = vpack.c.bf16 %v432, %v431
        %v441 = vld [vmem:[%s3] sm:$0xf]
        %v442 = vld [vmem:[%s3 + $0x4] sm:$0xf]
        %v443 = vld [vmem:[%s3 + $0x8] sm:$0xf]
        %v444 = vld [vmem:[%s3 + $0xc] sm:$0xf]
        %v445 = vld [vmem:[%s3 + $0x10] sm:$0xf]
        %v446 = vld [vmem:[%s3 + $0x14] sm:$0xf]
        %v447 = vld [vmem:[%s3 + $0x18] sm:$0xf]
        %v448 = vld [vmem:[%s3 + $0x1c] sm:$0xf]
        %v449 = vld [vmem:[%s3 + $0x20] sm:$0xf]
        %v450 = vld [vmem:[%s3 + $0x24] sm:$0xf]
        %v451 = vld [vmem:[%s3 + $0x28] sm:$0xf]
        %v452 = vld [vmem:[%s3 + $0x2c] sm:$0xf]
        %v453 = vld [vmem:[%s3 + $0x30] sm:$0xf]
        %v454 = vld [vmem:[%s3 + $0x34] sm:$0xf]
        %v455 = vld [vmem:[%s3 + $0x38] sm:$0xf]
        %v456 = vld [vmem:[%s3 + $0x3c] sm:$0xf]
        %v457 = vld [vmem:[%s4] sm:$0x1]
        %v459 = vlaneseq
        %v460 = vshrl.u32 %v459, 7
        %v461 = vsub.s32 0, %v460
        %v462 = vrot.slane %v457, %v461
        %v480 = vunpack.c.l.b16 %v441
        %v481 = vunpack.c.l.b16 %v442
        %v482 = vunpack.c.l.b16 %v443
        %v483 = vunpack.c.l.b16 %v444
        %v484 = vunpack.c.l.b16 %v445
        %v485 = vunpack.c.l.b16 %v446
        %v486 = vunpack.c.l.b16 %v447
        %v487 = vunpack.c.l.b16 %v448
        %v488 = vunpack.c.l.b16 %v449
        %v489 = vunpack.c.l.b16 %v450
        %v490 = vunpack.c.l.b16 %v451
        %v491 = vunpack.c.l.b16 %v452
        %v492 = vunpack.c.l.b16 %v453
        %v493 = vunpack.c.l.b16 %v454
        %v494 = vunpack.c.l.b16 %v455
        %v495 = vunpack.c.l.b16 %v456
        %v496 = vpack.c.b16 %v481, %v480
        %v497 = vpack.c.b16 %v483, %v482
        %v498 = vpack.c.b16 %v485, %v484
        %v499 = vpack.c.b16 %v487, %v486
        %v500 = vpack.c.b16 %v489, %v488
        %v501 = vpack.c.b16 %v491, %v490
        %v502 = vpack.c.b16 %v493, %v492
        %v503 = vpack.c.b16 %v495, %v494
        %512 = vmatprep.subr.bf16.mxu0 0
        %513 = vmatpush1.bf16.msra.mxu0 %v496
        %514 = vmatprep.subr.bf16.mxu0 0
        %515 = vmatpush1.bf16.msra.mxu0 %v497
        %516 = vmatprep.subr.bf16.mxu0 0
        %517 = vmatpush1.bf16.msra.mxu0 %v498
        %518 = vmatprep.subr.bf16.mxu0 0
        %519 = vmatpush1.bf16.msra.mxu0 %v499
        %520 = vmatprep.subr.bf16.mxu0 0
        %521 = vmatpush1.bf16.msra.mxu0 %v500
        %522 = vmatprep.subr.bf16.mxu0 0
        %523 = vmatpush1.bf16.msra.mxu0 %v501
        %524 = vmatprep.subr.bf16.mxu0 0
        %525 = vmatpush1.bf16.msra.mxu0 %v502
        %526 = vmatprep.subr.bf16.mxu0 0
        %527 = vmatpush1.bf16.msra.mxu0 %v503
        %528 = vmatprep.subr.bf16.mxu0 0
        %529 = vmatpush1.bf16.msra.mxu0 0
        %530 = vmatprep.subr.bf16.mxu0 0
        %531 = vmatpush1.bf16.msra.mxu0 0
        %532 = vmatprep.subr.bf16.mxu0 0
        %533 = vmatpush1.bf16.msra.mxu0 0
        %534 = vmatprep.subr.bf16.mxu0 0
        %535 = vmatpush1.bf16.msra.mxu0 0
        %536 = vmatprep.subr.bf16.mxu0 0
        %537 = vmatpush1.bf16.msra.mxu0 0
        %538 = vmatprep.subr.bf16.mxu0 0
        %539 = vmatpush1.bf16.msra.mxu0 0
        %540 = vmatprep.subr.bf16.mxu0 0
        %541 = vmatpush1.bf16.msra.mxu0 0
        %542 = vmatprep.subr.bf16.mxu0 0
        %543 = vmatpush1.bf16.msra.mxu0 0
        %544 = vmatprep.mubr.bf16.mxu0 0
        %545 = vmatmul.mubr.bf16.gmra.mrb[0].mxu0 %v433
        %v546 = vpop.f32.mrb[0].mxu0
        %v547 = vadd.f32 %v462, %v546
        %v548 = vpop.f32.mrb[0].mxu0
        %v549 = vpop.f32.mrb[0].mxu0
        %v550 = vadd.f32 %v462, %v549
        %v551 = vpop.f32.mrb[0].mxu0
        %552 = vmatprep.mubr.bf16.mxu0 0
        %553 = vmatmul.mubr.bf16.gmra.mrb[0].mxu0 %v434
        %v554 = vpop.f32.mrb[0].mxu0
        %v555 = vadd.f32 %v462, %v554
        %v556 = vpop.f32.mrb[0].mxu0
        %v557 = vpop.f32.mrb[0].mxu0
        %v558 = vadd.f32 %v462, %v557
        %v559 = vpop.f32.mrb[0].mxu0
        %560 = vmatprep.mubr.bf16.mxu0 0
        %561 = vmatmul.mubr.bf16.gmra.mrb[0].mxu0 %v435
        %v562 = vpop.f32.mrb[0].mxu0
        %v563 = vadd.f32 %v462, %v562
        %v564 = vpop.f32.mrb[0].mxu0
        %v565 = vpop.f32.mrb[0].mxu0
        %v566 = vadd.f32 %v462, %v565
        %v567 = vpop.f32.mrb[0].mxu0
        %568 = vmatprep.mubr.bf16.mxu0 0
        %569 = vmatmul.mubr.bf16.gmra.mrb[0].mxu0 %v436
        %v570 = vpop.f32.mrb[0].mxu0
        %v571 = vadd.f32 %v462, %v570
        %v572 = vpop.f32.mrb[0].mxu0
        %v573 = vpop.f32.mrb[0].mxu0
        %v574 = vadd.f32 %v462, %v573
        %v575 = vpop.f32.mrb[0].mxu0
        %576 = vmatprep.mubr.bf16.mxu0 0
        %577 = vmatmul.mubr.bf16.gmra.mrb[0].mxu0 %v437
        %v578 = vpop.f32.mrb[0].mxu0
        %v579 = vadd.f32 %v462, %v578
        %v580 = vpop.f32.mrb[0].mxu0
        %v581 = vpop.f32.mrb[0].mxu0
        %v582 = vadd.f32 %v462, %v581
        %v583 = vpop.f32.mrb[0].mxu0
        %584 = vmatprep.mubr.bf16.mxu0 0
        %585 = vmatmul.mubr.bf16.gmra.mrb[0].mxu0 %v438
        %v586 = vpop.f32.mrb[0].mxu0
        %v587 = vadd.f32 %v462, %v586
        %v588 = vpop.f32.mrb[0].mxu0
        %v589 = vpop.f32.mrb[0].mxu0
        %v590 = vadd.f32 %v462, %v589
        %v591 = vpop.f32.mrb[0].mxu0
        %592 = vmatprep.mubr.bf16.mxu0 0
        %593 = vmatmul.mubr.bf16.gmra.mrb[0].mxu0 %v439
        %v594 = vpop.f32.mrb[0].mxu0
        %v595 = vadd.f32 %v462, %v594
        %v596 = vpop.f32.mrb[0].mxu0
        %v597 = vpop.f32.mrb[0].mxu0
        %v598 = vadd.f32 %v462, %v597
        %v599 = vpop.f32.mrb[0].mxu0
        %600 = vmatprep.mubr.bf16.mxu0 0
        %601 = vmatmul.mubr.bf16.gmra.mrb[0].mxu0 %v440
        %v602 = vpop.f32.mrb[0].mxu0
        %v603 = vadd.f32 %v462, %v602
        %v604 = vpop.f32.mrb[0].mxu0
        %v605 = vpop.f32.mrb[0].mxu0
        %v606 = vadd.f32 %v462, %v605
        %v607 = vpop.f32.mrb[0].mxu0
        %608 = vdwg.mxu0
        %v609 = vmax.f32 %v547, 0.0
        %v610 = vmax.f32 %v550, 0.0
        %v611 = vmax.f32 %v555, 0.0
        %v612 = vmax.f32 %v558, 0.0
        %v613 = vmax.f32 %v563, 0.0
        %v614 = vmax.f32 %v566, 0.0
        %v615 = vmax.f32 %v571, 0.0
        %v616 = vmax.f32 %v574, 0.0
        %v617 = vmax.f32 %v579, 0.0
        %v618 = vmax.f32 %v582, 0.0
        %v619 = vmax.f32 %v587, 0.0
        %v620 = vmax.f32 %v590, 0.0
        %v621 = vmax.f32 %v595, 0.0
        %v622 = vmax.f32 %v598, 0.0
        %v623 = vmax.f32 %v603, 0.0
        %v624 = vmax.f32 %v606, 0.0
        %625 = vst [vmem:[%s245] sm:$0xff] %v609
        %626 = vst [vmem:[%s245 + $0x8] sm:$0xff] %v610
        %627 = vst [vmem:[%s245 + $0x10] sm:$0xff] %v611
        %628 = vst [vmem:[%s245 + $0x18] sm:$0xff] %v612
        %629 = vst [vmem:[%s245 + $0x20] sm:$0xff] %v613
        %630 = vst [vmem:[%s245 + $0x28] sm:$0xff] %v614
        %631 = vst [vmem:[%s245 + $0x30] sm:$0xff] %v615
        %632 = vst [vmem:[%s245 + $0x38] sm:$0xff] %v616
        %633 = vst [vmem:[%s245 + $0x40] sm:$0xff] %v617
        %634 = vst [vmem:[%s245 + $0x48] sm:$0xff] %v618
        %635 = vst [vmem:[%s245 + $0x50] sm:$0xff] %v619
        %636 = vst [vmem:[%s245 + $0x58] sm:$0xff] %v620
        %637 = vst [vmem:[%s245 + $0x60] sm:$0xff] %v621
        %638 = vst [vmem:[%s245 + $0x68] sm:$0xff] %v622
        %639 = vst [vmem:[%s245 + $0x70] sm:$0xff] %v623
        %640 = vst [vmem:[%s245 + $0x78] sm:$0xff] %v624
        %s641 = smul.u32 16, %s19
        %p642 = scmp.lt.s32.totalorder %s641, 31
        %s643 = scalar_select %p642, %s641, 31
        %s644 = smul.addr %s643, 8
        %s645 = scalar_lea.vmem %s5, %s644
        // Predicated region
        $region45: #{stacked_encoder_forward.1} parent=39 // pred_check
          %p646 = pneg %p147
        $region46: #{stacked_encoder_forward.1} parent=39 // pred_check_branch
          %648 = sbr.rel (%p646) target = $region48
        $region47: #{stacked_encoder_forward.1} parent=39 // pred_region
          %s649 = smul.u32 16, %s19
        $region48: #{stacked_encoder_forward.1} parent=39 // pred_fallthru
          _
      $region40: #{stacked_encoder_forward.1} parent=5 // pred_fallthru
        _
      %p650 = scmp.le.s32.totalorder 2, %s14
      // Predicated region
      $region49: #{stacked_encoder_forward.1} parent=5 // pred_check
        %p651 = pneg %p650
      $region50: #{stacked_encoder_forward.1} parent=5 // pred_check_branch
        %653 = sbr.rel (%p651) target = $region52
      $region51: #{stacked_encoder_forward.1} parent=5 // pred_region
        %s654 = ssub.s32 %s14, 2
        // Predicated region
        $region53: #{stacked_encoder_forward.1} parent=51 // pred_check
          %p655 = pneg %p153
        $region54: #{stacked_encoder_forward.1} parent=51 // pred_check_branch
          %657 = sbr.rel (%p655) target = $region56
        $region55: #{stacked_encoder_forward.1} parent=51 // pred_region
          %s658 = smul.u32 16, %s20
          %p659 = scmp.lt.s32.totalorder %s658, 31
          %s660 = scalar_select %p659, %s658, 31
          %s661 = smul.addr %s660, 8
          %s662 = scalar_lea.vmem %s5, %s661
        $region56: #{stacked_encoder_forward.1} parent=51 // pred_fallthru
          _
      $region52: #{stacked_encoder_forward.1} parent=5 // pred_fallthru
        _
    $region6: #{stacked_encoder_forward.1} parent=1 // loop_footer
      %s18 = sadd.s32 1, %s14
    $region7: #{stacked_encoder_forward.1} parent=1 // loop_footer_branch
      %13 = sbr.rel target = $region3
    $region8: #{stacked_encoder_forward.1} parent=1 // loop_exit
      _
    %663 = vsyncpa [#allocation3], 1
    %s664 = scalar_lea.sflag [#allocation3], 1
    %665 = vsyncpa %s664, 1

</llo_original>
